<compile_context>
chip_gen: v6e
topology: v6e:2x2x1
jax: 0.10.0
libtpu: 0.0.40
codegen_flags: <defaults>
</compile_context>

<pallas_src>
import jax
import jax.numpy as jnp
from jax.experimental import pallas as pl
from jax.experimental.pallas import tpu as pltpu


def mlp_kernel(x_ref, w1_ref, b1_ref, w2_ref, b2_ref, w3t_ref, b3_ref, o_ref):
    # x_ref : (bt, in)     w1 : (in, h)   b1 : (1, h)
    # w2    : (h, h)       b2 : (1, h)
    # w3t   : (1, h) (= w3.T)             b3 : (1, 1)
    # o_ref : (1, bt)  -- batch on the lane axis (lane-dense store)
    x = x_ref[...]
    h1 = jnp.dot(x, w1_ref[...], preferred_element_type=jnp.float32) + b1_ref[...]
    h1 = jnp.maximum(h1, 0.0)                                    # ReLU (f32)
    h2 = jnp.dot(h1.astype(w2_ref.dtype), w2_ref[...],
                 preferred_element_type=jnp.float32) + b2_ref[...]
    h2 = jnp.maximum(h2, 0.0)                                    # ReLU (f32)
    # Final layer computed transposed:  (1, h) . (bt, h)^T  ->  (1, bt)
    logits = jax.lax.dot_general(
        w3t_ref[...], h2.astype(w3t_ref.dtype),
        dimension_numbers=(((1,), (1,)), ((), ())),
        preferred_element_type=jnp.float32,
    ) + b3_ref[...]
    o_ref[...] = jax.nn.sigmoid(logits)                          # Sigmoid (f32, EUP)


def bool2_forward(x, params, *, batch_tile=None, mxu_dtype=jnp.float32):
    """Forward pass of Bool2Model.

    x: (B, in_size) float32.
    params: dict w1,b1,w2,b2,w3,b3 with weights stored (in_features, out_features) and
            biases (1, out_features), so x @ W + b == PyTorch's x @ W.T + b.
    batch_tile: rows per grid step (multiple of 128 when B > batch_tile).
    mxu_dtype: dtype of the matmul operands (jnp.bfloat16 recommended on v6e/v7x).
    """
    B, in_size = x.shape
    assert B > 0

    if batch_tile is None:
        batch_tile = min(B, 512)
    batch_tile = min(batch_tile, B)
    num_tiles = pl.cdiv(B, batch_tile)
    if num_tiles > 1:
        # Lane-dense output block + sublane constraint on the x block.
        assert batch_tile % 128 == 0, \
            "batch_tile must be a multiple of 128 when B > batch_tile"
    b_pad = num_tiles * batch_tile

    x_p = x if b_pad == B else jnp.pad(x, ((0, b_pad - B), (0, 0)))
    x_m = x_p.astype(mxu_dtype)
    w1m = params["w1"].astype(mxu_dtype)
    w2m = params["w2"].astype(mxu_dtype)
    w3t = params["w3"].T.astype(mxu_dtype)                     # (1, hidden)
    b1 = params["b1"].astype(jnp.float32)
    b2 = params["b2"].astype(jnp.float32)
    b3 = params["b3"].astype(jnp.float32)

    # Small constant operands: give each grid step the full tensor (block == full shape).
    full = lambda a: pl.BlockSpec(a.shape, lambda i: (0, 0))

    out_row = pl.pallas_call(
        mlp_kernel,
        out_shape=jax.ShapeDtypeStruct((1, b_pad), jnp.float32),
        grid_spec=pltpu.PrefetchScalarGridSpec(
            num_scalar_prefetch=0,
            grid=(num_tiles,),
            in_specs=[
                pl.BlockSpec((batch_tile, in_size), lambda i: (i, 0)),  # x tile (pipelined)
                full(w1m), full(b1),
                full(w2m), full(b2),
                full(w3t), full(b3),
            ],
            out_specs=pl.BlockSpec((1, batch_tile), lambda i: (0, i)),  # lane-dense out tile
        ),
        compiler_params=pltpu.CompilerParams(
            dimension_semantics=("parallel",),
        ),
    )(x_m, w1m, b1, w2m, b2, w3t, b3)

    return out_row.reshape(b_pad, 1)[:B]


def init_params(key, in_size, hidden):
    """Deterministic init mimicking nn.Linear (uniform in +/- 1/sqrt(fan_in))."""
    ks = jax.random.split(key, 6)

    def lin(kw, kb, fan_in, fan_out):
        bound = 1.0 / jnp.sqrt(fan_in)
        w = jax.random.uniform(kw, (fan_in, fan_out), jnp.float32, -bound, bound)
        b = jax.random.uniform(kb, (1, fan_out), jnp.float32, -bound, bound)
        return w, b

    w1, b1 = lin(ks[0], ks[1], in_size, hidden)
    w2, b2 = lin(ks[2], ks[3], hidden, hidden)
    w3, b3 = lin(ks[4], ks[5], hidden, 1)
    return {"w1": w1, "b1": b1, "w2": w2, "b2": b2, "w3": w3, "b3": b3}


def reference_forward(x, p):
    h1 = jnp.maximum(x @ p["w1"] + p["b1"], 0.0)
    h2 = jnp.maximum(h1 @ p["w2"] + p["b2"], 0.0)
    return jax.nn.sigmoid(h2 @ p["w3"] + p["b3"])


if __name__ == "__main__":
    key = jax.random.PRNGKey(0)
    k_x, k_p, k_x2 = jax.random.split(key, 3)

    in_size, hidden = 32, 32                     # consistent with config.in_size / hidden_size
    params = init_params(k_p, in_size, hidden)

    # 1) Small batch (toy config), f32 MXU path, strict numerical check.
    x_small = jax.random.normal(k_x, (8, in_size), jnp.float32)
    out_small = jax.block_until_ready(bool2_forward(x_small, params))
    ref_small = reference_forward(x_small, params)
    assert out_small.shape == (8, 1)
    assert jnp.allclose(out_small, ref_small, atol=1e-5, rtol=1e-5)

    # 2) Larger batch: exercises batch tiling (grid > 1), padding, lane-dense stores.
    x_big = jax.random.normal(k_x2, (1000, in_size), jnp.float32)
    out_big = jax.block_until_ready(bool2_forward(x_big, params, batch_tile=512))
    ref_big = reference_forward(x_big, params)
    assert out_big.shape == (1000, 1)
    assert jnp.allclose(out_big, ref_big, atol=1e-5, rtol=1e-5)

    # 3) bf16 MXU operands (recommended on v6e/v7x): f32 accumulation, looser tolerance.
    out_bf16 = jax.block_until_ready(
        bool2_forward(x_big, params, batch_tile=512, mxu_dtype=jnp.bfloat16))
    assert jnp.allclose(out_bf16, ref_big, atol=3e-2, rtol=3e-2)

    print("KERNEL_OK")
</pallas_src>

<mosaic_0001>
module attributes {stable_mosaic.version = 11 : i64} {
  func.func @mlp_kernel(%arg0: i32, %arg1: memref<8x32xf32, #tpu.memory_space<vmem>>, %arg2: memref<32x32xf32, #tpu.memory_space<vmem>>, %arg3: memref<1x32xf32, #tpu.memory_space<vmem>>, %arg4: memref<32x32xf32, #tpu.memory_space<vmem>>, %arg5: memref<1x32xf32, #tpu.memory_space<vmem>>, %arg6: memref<1x32xf32, #tpu.memory_space<vmem>>, %arg7: memref<1x1xf32, #tpu.memory_space<vmem>>, %arg8: memref<1x8xf32, #tpu.memory_space<vmem>>) attributes {dimension_semantics = [#tpu.dimension_semantics<parallel>], iteration_bounds = array<i64: 1>, scalar_prefetch = 0 : i64, scratch_operands = 0 : i64, tpu.core_type = #tpu.core_type<tc>, window_params = [{transform_indices = @transform_0, window_bounds = array<i64: 8, 32>}, {pipeline_mode = #tpu.pipeline_mode<synchronous>, transform_indices = @transform_1, window_bounds = array<i64: 32, 32>}, {pipeline_mode = #tpu.pipeline_mode<synchronous>, transform_indices = @transform_2, window_bounds = array<i64: 1, 32>}, {pipeline_mode = #tpu.pipeline_mode<synchronous>, transform_indices = @transform_3, window_bounds = array<i64: 32, 32>}, {pipeline_mode = #tpu.pipeline_mode<synchronous>, transform_indices = @transform_4, window_bounds = array<i64: 1, 32>}, {pipeline_mode = #tpu.pipeline_mode<synchronous>, transform_indices = @transform_5, window_bounds = array<i64: 1, 32>}, {pipeline_mode = #tpu.pipeline_mode<synchronous>, transform_indices = @transform_6, window_bounds = array<i64: 1, 1>}, {transform_indices = @transform_7, window_bounds = array<i64: 1, 8>}]} {
    %c0 = arith.constant 0 : index
    %c0_0 = arith.constant 0 : index
    %0 = vector.load %arg1[%c0, %c0_0] : memref<8x32xf32, #tpu.memory_space<vmem>>, vector<8x32xf32>
    %c0_1 = arith.constant 0 : index
    %c0_2 = arith.constant 0 : index
    %1 = vector.load %arg2[%c0_1, %c0_2] : memref<32x32xf32, #tpu.memory_space<vmem>>, vector<32x32xf32>
    %cst = arith.constant dense<0.000000e+00> : vector<8x32xf32>
    %2 = tpu.matmul %0, %1, %cst {dimension_numbers = #tpu.dot_dimension_numbers<[1], [0], [0], [1], [0, 0, 1, 1], [], []>} : vector<8x32xf32>, vector<32x32xf32>, vector<8x32xf32> -> vector<8x32xf32>
    %c0_3 = arith.constant 0 : index
    %c0_4 = arith.constant 0 : index
    %3 = vector.load %arg3[%c0_3, %c0_4] : memref<1x32xf32, #tpu.memory_space<vmem>>, vector<1x32xf32>
    %4 = vector.broadcast %3 : vector<1x32xf32> to vector<8x32xf32>
    %5 = arith.addf %2, %4 : vector<8x32xf32>
    %cst_5 = arith.constant 0.000000e+00 : f32
    %6 = vector.broadcast %cst_5 : f32 to vector<8x32xf32>
    %7 = arith.maximumf %5, %6 : vector<8x32xf32>
    %c0_6 = arith.constant 0 : index
    %c0_7 = arith.constant 0 : index
    %8 = vector.load %arg4[%c0_6, %c0_7] : memref<32x32xf32, #tpu.memory_space<vmem>>, vector<32x32xf32>
    %cst_8 = arith.constant dense<0.000000e+00> : vector<8x32xf32>
    %9 = tpu.matmul %7, %8, %cst_8 {dimension_numbers = #tpu.dot_dimension_numbers<[1], [0], [0], [1], [0, 0, 1, 1], [], []>} : vector<8x32xf32>, vector<32x32xf32>, vector<8x32xf32> -> vector<8x32xf32>
    %c0_9 = arith.constant 0 : index
    %c0_10 = arith.constant 0 : index
    %10 = vector.load %arg5[%c0_9, %c0_10] : memref<1x32xf32, #tpu.memory_space<vmem>>, vector<1x32xf32>
    %11 = vector.broadcast %10 : vector<1x32xf32> to vector<8x32xf32>
    %12 = arith.addf %9, %11 : vector<8x32xf32>
    %cst_11 = arith.constant 0.000000e+00 : f32
    %13 = vector.broadcast %cst_11 : f32 to vector<8x32xf32>
    %14 = arith.maximumf %12, %13 : vector<8x32xf32>
    %c0_12 = arith.constant 0 : index
    %c0_13 = arith.constant 0 : index
    %15 = vector.load %arg6[%c0_12, %c0_13] : memref<1x32xf32, #tpu.memory_space<vmem>>, vector<1x32xf32>
    %cst_14 = arith.constant dense<0.000000e+00> : vector<1x8xf32>
    %16 = tpu.matmul %15, %14, %cst_14 {dimension_numbers = #tpu.dot_dimension_numbers<[1], [1], [0], [0], [0, 0, 1, 0], [], []>} : vector<1x32xf32>, vector<8x32xf32>, vector<1x8xf32> -> vector<1x8xf32>
    %c0_15 = arith.constant 0 : index
    %c0_16 = arith.constant 0 : index
    %17 = vector.load %arg7[%c0_15, %c0_16] : memref<1x1xf32, #tpu.memory_space<vmem>>, vector<1x1xf32>
    %18 = vector.broadcast %17 : vector<1x1xf32> to vector<1x8xf32>
    %19 = arith.addf %16, %18 : vector<1x8xf32>
    %20 = arith.negf %19 : vector<1x8xf32>
    %21 = math.exp %20 : vector<1x8xf32>
    %cst_17 = arith.constant 1.000000e+00 : f32
    %22 = vector.broadcast %cst_17 : f32 to vector<1x8xf32>
    %23 = arith.addf %22, %21 : vector<1x8xf32>
    %24 = arith.divf %22, %23 : vector<1x8xf32>
    %c0_18 = arith.constant 0 : index
    %c0_19 = arith.constant 0 : index
    %25 = vector.load %arg8[%c0_18, %c0_19] : memref<1x8xf32, #tpu.memory_space<vmem>>, vector<1x8xf32>
    tpu.vector_store %arg8[%c0_18, %c0_19], %24 {strides = array<i32>} : memref<1x8xf32, #tpu.memory_space<vmem>>, vector<1x8xf32>,
    return
  }
  func.func @transform_0(%arg0: i32) -> (i32, i32) {
    %c0_i32 = arith.constant 0 : i32
    %c0_i32_0 = arith.constant 0 : i32
    return %arg0, %c0_i32 : i32, i32
  }
  func.func @transform_1(%arg0: i32) -> (i32, i32) {
    %c0_i32 = arith.constant 0 : i32
    %c0_i32_0 = arith.constant 0 : i32
    %c0_i32_1 = arith.constant 0 : i32
    return %c0_i32, %c0_i32_0 : i32, i32
  }
  func.func @transform_2(%arg0: i32) -> (i32, i32) {
    %c0_i32 = arith.constant 0 : i32
    %c0_i32_0 = arith.constant 0 : i32
    %c0_i32_1 = arith.constant 0 : i32
    return %c0_i32, %c0_i32_0 : i32, i32
  }
  func.func @transform_3(%arg0: i32) -> (i32, i32) {
    %c0_i32 = arith.constant 0 : i32
    %c0_i32_0 = arith.constant 0 : i32
    %c0_i32_1 = arith.constant 0 : i32
    return %c0_i32, %c0_i32_0 : i32, i32
  }
  func.func @transform_4(%arg0: i32) -> (i32, i32) {
    %c0_i32 = arith.constant 0 : i32
    %c0_i32_0 = arith.constant 0 : i32
    %c0_i32_1 = arith.constant 0 : i32
    return %c0_i32, %c0_i32_0 : i32, i32
  }
  func.func @transform_5(%arg0: i32) -> (i32, i32) {
    %c0_i32 = arith.constant 0 : i32
    %c0_i32_0 = arith.constant 0 : i32
    %c0_i32_1 = arith.constant 0 : i32
    return %c0_i32, %c0_i32_0 : i32, i32
  }
  func.func @transform_6(%arg0: i32) -> (i32, i32) {
    %c0_i32 = arith.constant 0 : i32
    %c0_i32_0 = arith.constant 0 : i32
    %c0_i32_1 = arith.constant 0 : i32
    return %c0_i32, %c0_i32_0 : i32, i32
  }
  func.func @transform_7(%arg0: i32) -> (i32, i32) {
    %c0_i32 = arith.constant 0 : i32
    %c0_i32_0 = arith.constant 0 : i32
    return %c0_i32, %arg0 : i32, i32
  }
}

</mosaic_0001>

<llo_original>
// kernel: tpu_custom_call.1
$region0: #{tpu_custom_call.1}
  #allocation0 [shape = 'u32[]', space=smem, size = 0x4, offset = 0x4, fixed_abs, tag = 'smem constant byte address 0x4 - core index']
  #allocation1 [shape = 'u32[144,128]{1,0:T(1,128)}', space=vmem, size = 0x12000, scoped, tag = 'internal scratch']
  #allocation2 [shape = 'f32[1,1]{1,0:T(1,128)S(1)}', space=vmem, size = 0x200, scoped, tag = 'scoped memory for tpu_custom_call.1']
  %s0 = inlined_call_operand.hbm [shape: f32[8,32], index: 0, kind: input, shape index: {}]
  %s1 = inlined_call_operand.hbm [shape: f32[32,32], index: 1, kind: input, shape index: {}]
  %s2 = inlined_call_operand.vmem [shape: f32[1,32], index: 2, kind: input, shape index: {}]
  %s3 = inlined_call_operand.hbm [shape: f32[32,32], index: 3, kind: input, shape index: {}]
  %s4 = inlined_call_operand.vmem [shape: f32[1,32], index: 4, kind: input, shape index: {}]
  %s5 = inlined_call_operand.vmem [shape: f32[1,32], index: 5, kind: input, shape index: {}]
  %s6 = inlined_call_operand.<no memory space> [shape: f32[1,1], index: 6, kind: input, shape index: {}]
  %s7 = inlined_call_operand.hbm [shape: f32[1,8], index: 7, kind: output, shape index: {}]
  %s8 = sld [smem:[#allocation0]]
  $region50: #{tpu_custom_call.1} parent=0
    _
  %s10 = ssub.s32 1, %s8
  %s11 = scalar_select 0, %s10, %s8
  %v12 = vstv %s6
  %13 = vst [vmem:[#allocation2] sm:$0x1] %v12
  $region1: #{tpu_custom_call.1} parent=0
    #allocation3 [shape = 'u8[4096]{0}', space=vmem, size = 0x1000, scoped, tag = 'input window, operand 0, single buffered']
    #allocation4 [shape = 's32[1]{0}', space=sflag, size = 0x4, scoped, tag = 'scoped memory for tpu_custom_call.1']
    #allocation5 [shape = 's32[1]{0}', space=sflag, size = 0x4, scoped, tag = 'scoped memory for tpu_custom_call.1']
    #allocation6 [shape = 'u8[16384]{0}', space=vmem, size = 0x4000, scoped, tag = 'input window, operand 1, single buffered']
    #allocation7 [shape = 's32[1]{0}', space=sflag, size = 0x4, scoped, tag = 'scoped memory for tpu_custom_call.1']
    #allocation8 [shape = 'u8[16384]{0}', space=vmem, size = 0x4000, scoped, tag = 'input window, operand 3, single buffered']
    #allocation9 [shape = 'u8[512]{0}', space=vmem, size = 0x400, scoped, tag = 'output window, operand 0, single buffered']
    %14 = vsyncpa [#allocation4], 0
    %15 = vsyncpa [#allocation7], 0
    %16 = vsyncpa [#allocation5], 0
    // Predicated region
    $region2: #{tpu_custom_call.1} parent=1 // pred_check
      _
    $region3: #{tpu_custom_call.1} parent=1 // pred_check_branch
      %18 = sbr.rel (0) target = $region5
    $region4: #{tpu_custom_call.1} parent=1 // pred_region
      %s20 = ssub.s32 128, 128
      %21 = vsyncadd [#allocation4], %s20
      %s23 = sshll.u32 [#allocation3], 4
      %s24 = int_to_ptr.vmem [resolvable:$true] %s23
      %26 = dma.hbm_to_vmem [thread:$0]  %s0, 128, %s24, [#allocation4]
    $region5: #{tpu_custom_call.1} parent=1 // pred_fallthru
      _
    // Predicated region
    $region6: #{tpu_custom_call.1} parent=1 // pred_check
      _
    $region7: #{tpu_custom_call.1} parent=1 // pred_check_branch
      %28 = sbr.rel (0) target = $region9
    $region8: #{tpu_custom_call.1} parent=1 // pred_region
      %s30 = ssub.s32 512, 512
      %31 = vsyncadd [#allocation7], %s30
      %s32 = sshll.u32 [#allocation6], 4
      %s33 = int_to_ptr.vmem [resolvable:$true] %s32
      %38 = dma.hbm_to_vmem [thread:$0]  %s1, 512, %s33, [#allocation7], 128, 128, 8
    $region9: #{tpu_custom_call.1} parent=1 // pred_fallthru
      _
    // Predicated region
    $region10: #{tpu_custom_call.1} parent=1 // pred_check
      _
    $region11: #{tpu_custom_call.1} parent=1 // pred_check_branch
      %40 = sbr.rel (0) target = $region13
    $region12: #{tpu_custom_call.1} parent=1 // pred_region
      _
    $region13: #{tpu_custom_call.1} parent=1 // pred_fallthru
      _
    // Predicated region
    $region14: #{tpu_custom_call.1} parent=1 // pred_check
      _
    $region15: #{tpu_custom_call.1} parent=1 // pred_check_branch
      %42 = sbr.rel (0) target = $region17
    $region16: #{tpu_custom_call.1} parent=1 // pred_region
      %s44 = ssub.s32 512, 512
      %45 = vsyncadd [#allocation7], %s44
      %s46 = sshll.u32 [#allocation8], 4
      %s47 = int_to_ptr.vmem [resolvable:$true] %s46
      %52 = dma.hbm_to_vmem [thread:$0]  %s3, 512, %s47, [#allocation7], 128, 128, 8
    $region17: #{tpu_custom_call.1} parent=1 // pred_fallthru
      _
    // Predicated region
    $region18: #{tpu_custom_call.1} parent=1 // pred_check
      _
    $region19: #{tpu_custom_call.1} parent=1 // pred_check_branch
      %54 = sbr.rel (0) target = $region21
    $region20: #{tpu_custom_call.1} parent=1 // pred_region
      _
    $region21: #{tpu_custom_call.1} parent=1 // pred_fallthru
      _
    // Predicated region
    $region22: #{tpu_custom_call.1} parent=1 // pred_check
      _
    $region23: #{tpu_custom_call.1} parent=1 // pred_check_branch
      %56 = sbr.rel (0) target = $region25
    $region24: #{tpu_custom_call.1} parent=1 // pred_region
      _
    $region25: #{tpu_custom_call.1} parent=1 // pred_fallthru
      _
    // Predicated region
    $region26: #{tpu_custom_call.1} parent=1 // pred_check
      _
    $region27: #{tpu_custom_call.1} parent=1 // pred_check_branch
      %58 = sbr.rel (0) target = $region29
    $region28: #{tpu_custom_call.1} parent=1 // pred_region
      _
    $region29: #{tpu_custom_call.1} parent=1 // pred_fallthru
      _
    // Predicated region
    $region30: #{tpu_custom_call.1} parent=1 // pred_check
      _
    $region31: #{tpu_custom_call.1} parent=1 // pred_check_branch
      %60 = sbr.rel (0) target = $region33
    $region32: #{tpu_custom_call.1} parent=1 // pred_region
      %61 = dma.done [#allocation4], 128
    $region33: #{tpu_custom_call.1} parent=1 // pred_fallthru
      _
    // Predicated region
    $region34: #{tpu_custom_call.1} parent=1 // pred_check
      _
    $region35: #{tpu_custom_call.1} parent=1 // pred_check_branch
      %63 = sbr.rel (0) target = $region37
    $region36: #{tpu_custom_call.1} parent=1 // pred_region
      %64 = dma.done [#allocation7], 512
    $region37: #{tpu_custom_call.1} parent=1 // pred_fallthru
      _
    // Predicated region
    $region38: #{tpu_custom_call.1} parent=1 // pred_check
      _
    $region39: #{tpu_custom_call.1} parent=1 // pred_check_branch
      %66 = sbr.rel (0) target = $region41
    $region40: #{tpu_custom_call.1} parent=1 // pred_region
      %67 = dma.done [#allocation7], 512
    $region41: #{tpu_custom_call.1} parent=1 // pred_fallthru
      _
    %v68 = vld [vmem:[#allocation3] sm:$0xff]
    %v69 = vld [vmem:[#allocation6] sm:$0xff]
    %v70 = vld [vmem:[#allocation6 + $0x8] sm:$0xff]
    %v71 = vld [vmem:[#allocation6 + $0x10] sm:$0xff]
    %v72 = vld [vmem:[#allocation6 + $0x18] sm:$0xff]
    %v73 = vld [vmem:[%s2] sm:$0x1]
    %v75 = vlaneseq
    %v76 = vshrl.u32 %v75, 7
    %v77 = vsub.s32 0, %v76
    %v78 = vrot.slane %v73, %v77
    %vm80 = vcmask 261120
    %v82 = vsel %vm80, %v68, 0
    %84 = vmatprep.subr.mxu0 0.0
    %85 = vmatpush1.msra.mxu0 0.0
    %86 = vmatprep.subr.mxu0 0.0
    %87 = vmatpush1.msra.mxu0 0.0
    %88 = vmatprep.subr.mxu0 0.0
    %89 = vmatpush1.msra.mxu0 0.0
    %90 = vmatprep.subr.mxu0 0.0
    %91 = vmatpush1.msra.mxu0 0.0
    %92 = vmatprep.subr.mxu0 0.0
    %93 = vmatpush1.msra.mxu0 0.0
    %94 = vmatprep.subr.mxu0 0.0
    %95 = vmatpush1.msra.mxu0 0.0
    %96 = vmatprep.subr.mxu0 0.0
    %97 = vmatpush1.msra.mxu0 0.0
    %98 = vmatprep.subr.mxu0 0.0
    %99 = vmatpush1.msra.mxu0 0.0
    %100 = vmatprep.subr.mxu0 0.0
    %101 = vmatpush1.msra.mxu0 0.0
    %102 = vmatprep.subr.mxu0 0.0
    %103 = vmatpush1.msra.mxu0 0.0
    %104 = vmatprep.subr.mxu0 0.0
    %105 = vmatpush1.msra.mxu0 0.0
    %106 = vmatprep.subr.mxu0 0.0
    %107 = vmatpush1.msra.mxu0 0.0
    %108 = vmatprep.subr.mxu0 0.0
    %109 = vmatpush1.msra.mxu0 %v72
    %110 = vmatprep.subr.mxu0 0.0
    %111 = vmatpush1.msra.mxu0 %v71
    %112 = vmatprep.subr.mxu0 0.0
    %113 = vmatpush1.msra.mxu0 %v70
    %114 = vmatprep.subr.mxu0 0.0
    %115 = vmatpush1.msra.mxu0 %v69
    %116 = vmatprep.subr.mxu0 0.0
    %117 = vmatpush2.msra.mxu0 0.0
    %118 = vmatprep.subr.mxu0 0.0
    %119 = vmatpush2.msra.mxu0 0.0
    %120 = vmatprep.subr.mxu0 0.0
    %121 = vmatpush2.msra.mxu0 0.0
    %122 = vmatprep.subr.mxu0 0.0
    %123 = vmatpush2.msra.mxu0 0.0
    %124 = vmatprep.subr.mxu0 0.0
    %125 = vmatpush2.msra.mxu0 0.0
    %126 = vmatprep.subr.mxu0 0.0
    %127 = vmatpush2.msra.mxu0 0.0
    %128 = vmatprep.subr.mxu0 0.0
    %129 = vmatpush2.msra.mxu0 0.0
    %130 = vmatprep.subr.mxu0 0.0
    %131 = vmatpush2.msra.mxu0 0.0
    %132 = vmatprep.subr.mxu0 0.0
    %133 = vmatpush2.msra.mxu0 0.0
    %134 = vmatprep.subr.mxu0 0.0
    %135 = vmatpush2.msra.mxu0 0.0
    %136 = vmatprep.subr.mxu0 0.0
    %137 = vmatpush2.msra.mxu0 0.0
    %138 = vmatprep.subr.mxu0 0.0
    %139 = vmatpush2.msra.mxu0 0.0
    %140 = vmatprep.subr.mxu0 0.0
    %141 = vmatpush2.msra.mxu0 0.0
    %142 = vmatprep.subr.mxu0 0.0
    %143 = vmatpush2.msra.mxu0 0.0
    %144 = vmatprep.subr.mxu0 0.0
    %145 = vmatpush2.msra.mxu0 0.0
    %146 = vmatprep.subr.mxu0 0.0
    %147 = vmatpush2.msra.mxu0 0.0
    %148 = vmatprep.mubr.f32.mxu0 0.0
    %149 = vmatmul.mubr.f32.gmra.mxu0 %v82
    %v150 = vpop.f32.mrf.mxu0
    %v151 = vadd.f32 %v78, %v150
    %v152 = vpop.f32.mrf.mxu0
    %153 = vdwg.mxu0
    %v154 = vmax.f32 %v151, 0.0
    %v155 = vld [vmem:[#allocation8] sm:$0xff]
    %v156 = vld [vmem:[#allocation8 + $0x8] sm:$0xff]
    %v157 = vld [vmem:[#allocation8 + $0x10] sm:$0xff]
    %v158 = vld [vmem:[#allocation8 + $0x18] sm:$0xff]
    %v159 = vld [vmem:[%s4] sm:$0x1]
    %v161 = vlaneseq
    %v162 = vshrl.u32 %v161, 7
    %v163 = vsub.s32 0, %v162
    %v164 = vrot.slane %v159, %v163
    %v167 = vsel %vm80, %v154, 0
    %169 = vmatprep.subr.mxu0 0.0
    %170 = vmatpush1.msra.mxu0 0.0
    %171 = vmatprep.subr.mxu0 0.0
    %172 = vmatpush1.msra.mxu0 0.0
    %173 = vmatprep.subr.mxu0 0.0
    %174 = vmatpush1.msra.mxu0 0.0
    %175 = vmatprep.subr.mxu0 0.0
    %176 = vmatpush1.msra.mxu0 0.0
    %177 = vmatprep.subr.mxu0 0.0
    %178 = vmatpush1.msra.mxu0 0.0
    %179 = vmatprep.subr.mxu0 0.0
    %180 = vmatpush1.msra.mxu0 0.0
    %181 = vmatprep.subr.mxu0 0.0
    %182 = vmatpush1.msra.mxu0 0.0
    %183 = vmatprep.subr.mxu0 0.0
    %184 = vmatpush1.msra.mxu0 0.0
    %185 = vmatprep.subr.mxu0 0.0
    %186 = vmatpush1.msra.mxu0 0.0
    %187 = vmatprep.subr.mxu0 0.0
    %188 = vmatpush1.msra.mxu0 0.0
    %189 = vmatprep.subr.mxu0 0.0
    %190 = vmatpush1.msra.mxu0 0.0
    %191 = vmatprep.subr.mxu0 0.0
    %192 = vmatpush1.msra.mxu0 0.0
    %193 = vmatprep.subr.mxu0 0.0
    %194 = vmatpush1.msra.mxu0 %v158
    %195 = vmatprep.subr.mxu0 0.0
    %196 = vmatpush1.msra.mxu0 %v157
    %197 = vmatprep.subr.mxu0 0.0
    %198 = vmatpush1.msra.mxu0 %v156
    %199 = vmatprep.subr.mxu0 0.0
    %200 = vmatpush1.msra.mxu0 %v155
    %201 = vmatprep.subr.mxu0 0.0
    %202 = vmatpush2.msra.mxu0 0.0
    %203 = vmatprep.subr.mxu0 0.0
    %204 = vmatpush2.msra.mxu0 0.0
    %205 = vmatprep.subr.mxu0 0.0
    %206 = vmatpush2.msra.mxu0 0.0
    %207 = vmatprep.subr.mxu0 0.0
    %208 = vmatpush2.msra.mxu0 0.0
    %209 = vmatprep.subr.mxu0 0.0
    %210 = vmatpush2.msra.mxu0 0.0
    %211 = vmatprep.subr.mxu0 0.0
    %212 = vmatpush2.msra.mxu0 0.0
    %213 = vmatprep.subr.mxu0 0.0
    %214 = vmatpush2.msra.mxu0 0.0
    %215 = vmatprep.subr.mxu0 0.0
    %216 = vmatpush2.msra.mxu0 0.0
    %217 = vmatprep.subr.mxu0 0.0
    %218 = vmatpush2.msra.mxu0 0.0
    %219 = vmatprep.subr.mxu0 0.0
    %220 = vmatpush2.msra.mxu0 0.0
    %221 = vmatprep.subr.mxu0 0.0
    %222 = vmatpush2.msra.mxu0 0.0
    %223 = vmatprep.subr.mxu0 0.0
    %224 = vmatpush2.msra.mxu0 0.0
    %225 = vmatprep.subr.mxu0 0.0
    %226 = vmatpush2.msra.mxu0 0.0
    %227 = vmatprep.subr.mxu0 0.0
    %228 = vmatpush2.msra.mxu0 0.0
    %229 = vmatprep.subr.mxu0 0.0
    %230 = vmatpush2.msra.mxu0 0.0
    %231 = vmatprep.subr.mxu0 0.0
    %232 = vmatpush2.msra.mxu0 0.0
    %233 = vmatprep.mubr.f32.mxu0 0.0
    %234 = vmatmul.mubr.f32.gmra.mxu0 %v167
    %v235 = vpop.f32.mrf.mxu0
    %v236 = vadd.f32 %v164, %v235
    %v237 = vpop.f32.mrf.mxu0
    %238 = vdwg.mxu0
    %v239 = vmax.f32 %v236, 0.0
    %v240 = vld [vmem:[%s5] sm:$0x1]
    %v241 = vld [vmem:[#allocation2] sm:$0x1]
    %243 = vset.pattern.permute.xlu0 0
    %244 = vperm.xlu0 %243, %v241
    %v245 = vpop.permute.xlu0 %244
    %v247 = vlaneseq
    %v248 = vshrl.u32 %v247, 7
    %v249 = vsub.s32 0, %v248
    %v250 = vrot.slane %v245, %v249
    %v252 = vsel %vm80, %v240, 0
    %v255 = vsel %vm80, %v239, 0
    %257 = vmatprep.subr.mxu0 0.0
    %258 = vmatpush1.xpose.msra.mxu0 0.0
    %259 = vmatprep.subr.mxu0 0.0
    %260 = vmatpush1.xpose.msra.mxu0 0.0
    %261 = vmatprep.subr.mxu0 0.0
    %262 = vmatpush1.xpose.msra.mxu0 0.0
    %263 = vmatprep.subr.mxu0 0.0
    %264 = vmatpush1.xpose.msra.mxu0 0.0
    %265 = vmatprep.subr.mxu0 0.0
    %266 = vmatpush1.xpose.msra.mxu0 0.0
    %267 = vmatprep.subr.mxu0 0.0
    %268 = vmatpush1.xpose.msra.mxu0 0.0
    %269 = vmatprep.subr.mxu0 0.0
    %270 = vmatpush1.xpose.msra.mxu0 0.0
    %271 = vmatprep.subr.mxu0 0.0
    %272 = vmatpush1.xpose.msra.mxu0 0.0
    %273 = vmatprep.subr.mxu0 0.0
    %274 = vmatpush1.xpose.msra.mxu0 0.0
    %275 = vmatprep.subr.mxu0 0.0
    %276 = vmatpush1.xpose.msra.mxu0 0.0
    %277 = vmatprep.subr.mxu0 0.0
    %278 = vmatpush1.xpose.msra.mxu0 0.0
    %279 = vmatprep.subr.mxu0 0.0
    %280 = vmatpush1.xpose.msra.mxu0 0.0
    %281 = vmatprep.subr.mxu0 0.0
    %282 = vmatpush1.xpose.msra.mxu0 0.0
    %283 = vmatprep.subr.mxu0 0.0
    %284 = vmatpush1.xpose.msra.mxu0 0.0
    %285 = vmatprep.subr.mxu0 0.0
    %286 = vmatpush1.xpose.msra.mxu0 0.0
    %287 = vmatprep.subr.mxu0 0.0
    %288 = vmatpush1.xpose.msra.mxu0 %v255
    %289 = vmatprep.subr.mxu0 0.0
    %290 = vmatpush2.xpose.msra.mxu0 0.0
    %291 = vmatprep.subr.mxu0 0.0
    %292 = vmatpush2.xpose.msra.mxu0 0.0
    %293 = vmatprep.subr.mxu0 0.0
    %294 = vmatpush2.xpose.msra.mxu0 0.0
    %295 = vmatprep.subr.mxu0 0.0
    %296 = vmatpush2.xpose.msra.mxu0 0.0
    %297 = vmatprep.subr.mxu0 0.0
    %298 = vmatpush2.xpose.msra.mxu0 0.0
    %299 = vmatprep.subr.mxu0 0.0
    %300 = vmatpush2.xpose.msra.mxu0 0.0
    %301 = vmatprep.subr.mxu0 0.0
    %302 = vmatpush2.xpose.msra.mxu0 0.0
    %303 = vmatprep.subr.mxu0 0.0
    %304 = vmatpush2.xpose.msra.mxu0 0.0
    %305 = vmatprep.subr.mxu0 0.0
    %306 = vmatpush2.xpose.msra.mxu0 0.0
    %307 = vmatprep.subr.mxu0 0.0
    %308 = vmatpush2.xpose.msra.mxu0 0.0
    %309 = vmatprep.subr.mxu0 0.0
    %310 = vmatpush2.xpose.msra.mxu0 0.0
    %311 = vmatprep.subr.mxu0 0.0
    %312 = vmatpush2.xpose.msra.mxu0 0.0
    %313 = vmatprep.subr.mxu0 0.0
    %314 = vmatpush2.xpose.msra.mxu0 0.0
    %315 = vmatprep.subr.mxu0 0.0
    %316 = vmatpush2.xpose.msra.mxu0 0.0
    %317 = vmatprep.subr.mxu0 0.0
    %318 = vmatpush2.xpose.msra.mxu0 0.0
    %319 = vmatprep.subr.mxu0 0.0
    %320 = vmatpush2.xpose.msra.mxu0 0.0
    %321 = vmatprep.mubr.f32.mxu0 0.0
    %322 = vmatmul.mubr.f32.gmra.mxu0 %v252
    %v323 = vpop.f32.mrf.mxu0
    %v324 = vadd.f32 %v250, %v323
    %v325 = vpop.f32.mrf.mxu0
    %326 = vdwg.mxu0
    %v327 = vxor.u32 %v324, 2147483648
    %v328 = vmul.f32 %v327, 1.442695
    %v329 = vpow.pop %v328
    %v330 = vadd.f32 %v329, 1.0
    %v331 = vrcp.pop %v330
    %v332 = vmul.f32 1.0, %v331
    %vm333 = vcmask 57344
    %334 = vst.msk [vmem:[#allocation9] sm:$0x1] %vm333, %v332
    // Predicated region
    $region42: #{tpu_custom_call.1} parent=1 // pred_check
      _
    $region43: #{tpu_custom_call.1} parent=1 // pred_check_branch
      %336 = sbr.rel (0) target = $region45
    $region44: #{tpu_custom_call.1} parent=1 // pred_region
      %s338 = ssub.s32 16, 16
      %339 = vsyncadd [#allocation5], %s338
      %s341 = sshll.u32 [#allocation9], 4
      %s342 = int_to_ptr.vmem [resolvable:$true] %s341
      %344 = dma.vmem_to_hbm [thread:$0]  %s342, 16, %s7, [#allocation5]
    $region45: #{tpu_custom_call.1} parent=1 // pred_fallthru
      _
    // Predicated region
    $region46: #{tpu_custom_call.1} parent=1 // pred_check
      _
    $region47: #{tpu_custom_call.1} parent=1 // pred_check_branch
      %346 = sbr.rel (0) target = $region49
    $region48: #{tpu_custom_call.1} parent=1 // pred_region
      %347 = dma.done [#allocation5], 16
    $region49: #{tpu_custom_call.1} parent=1 // pred_fallthru
      _
    %348 = vsyncpa [#allocation4], 1
    %349 = vsyncpa [#allocation7], 1
    %350 = vsyncpa [#allocation5], 1

</llo_original>
